<compile_context>
chip_gen: v7x
topology: tpu7x:2x2x1
jax: 0.10.0
libtpu: 0.0.40
codegen_flags: <defaults>
</compile_context>

<pallas_src>
import math

import jax
import jax.numpy as jnp
from jax.experimental import pallas as pl
from jax.experimental.pallas import tpu as pltpu


SIGMA_INIT = 0.017
LANE = 128


def _round_up(v, m):
    return ((v + m - 1) // m) * m


# ---------------------------------------------------------------------------
# Pallas kernels
# ---------------------------------------------------------------------------

def _gemm_bias_relu_kernel(x_ref, w_ref, b_ref, o_ref):
    """o = relu(x @ w + b) for one M-tile; bf16 in, f32 MXU acc, bf16 out."""
    acc = jnp.dot(x_ref[...], w_ref[...], preferred_element_type=jnp.float32)
    o_ref[...] = jnp.maximum(acc + b_ref[...], 0.0).astype(o_ref.dtype)


def gemm_bias_relu(x, w, b, *, tm=256):
    """relu(x @ w + b), tiled over rows of x (the im2col patch rows)."""
    m, k = x.shape
    n = w.shape[1]
    tm = min(tm, _round_up(m, 8))
    m_pad = _round_up(m, tm)
    if m_pad != m:
        x = jnp.pad(x, ((0, m_pad - m), (0, 0)))
    out = pl.pallas_call(
        _gemm_bias_relu_kernel,
        out_shape=jax.ShapeDtypeStruct((m_pad, n), jnp.bfloat16),
        grid=(m_pad // tm,),
        in_specs=[
            pl.BlockSpec((tm, k), lambda i: (i, 0)),   # patch-row tile
            pl.BlockSpec((k, n), lambda i: (0, 0)),    # full weight matrix
            pl.BlockSpec((1, n), lambda i: (0, 0)),    # bias row
        ],
        out_specs=pl.BlockSpec((tm, n), lambda i: (i, 0)),
        compiler_params=pltpu.CompilerParams(
            dimension_semantics=("parallel",),
            vmem_limit_bytes=48 * 1024 * 1024,
        ),
    )(x, w, b)
    return out[:m]


def _fused_noisy_fc_kernel(x_ref, w1_ref, sw1_ref, ew1_ref, b1_ref, sb1_ref,
                           eb1_ref, w2_ref, sw2_ref, ew2_ref, b2_ref, sb2_ref,
                           eb2_ref, o_ref):
    """Both NoisyLinear layers in one un-gridded call (everything in VMEM):

        h = relu(x @ (w1 + s1*eps_w1) + b1 + sb1*eps_b1)
        o =      h @ (w2 + s2*eps_w2) + b2 + sb2*eps_b2
    """
    # Noisy weights: bf16 elementwise math (bf16 VALU on v6e/v7x), f32 biases.
    # TODO(synk): gate the weight-noise math to an f32 path on v5e (no bf16 VPU).
    v1 = w1_ref[...] + sw1_ref[...] * ew1_ref[...]
    h = jnp.dot(x_ref[...], v1, preferred_element_type=jnp.float32)
    h = jnp.maximum(h + b1_ref[...] + sb1_ref[...] * eb1_ref[...], 0.0)

    v2 = w2_ref[...] + sw2_ref[...] * ew2_ref[...]
    out = jnp.dot(h.astype(jnp.bfloat16), v2, preferred_element_type=jnp.float32)
    o_ref[...] = out + b2_ref[...] + sb2_ref[...] * eb2_ref[...]


def fused_noisy_fc(x, kp, ew1, eb1, ew2, eb2):
    m = x.shape[0]
    a_pad = kp["fw2"].shape[1]
    return pl.pallas_call(
        _fused_noisy_fc_kernel,
        out_shape=jax.ShapeDtypeStruct((m, a_pad), jnp.float32),
        compiler_params=pltpu.CompilerParams(
            vmem_limit_bytes=48 * 1024 * 1024),
    )(x, kp["fw1"], kp["fsw1"], ew1, kp["fb1"], kp["fsb1"], eb1,
      kp["fw2"], kp["fsw2"], ew2, kp["fb2"], kp["fsb2"], eb2)


# ---------------------------------------------------------------------------
# Glue: NHWC im2col (bf16) + conv-as-GEMM; compute stays in the kernels
# ---------------------------------------------------------------------------

def im2col_nhwc(x, kh, kw, stride):
    n, h, w, c = x.shape
    oh = (h - kh) // stride + 1
    ow = (w - kw) // stride + 1
    cols = []
    for i in range(kh):
        for j in range(kw):
            cols.append(x[:, i:i + stride * (oh - 1) + 1:stride,
                          j:j + stride * (ow - 1) + 1:stride, :])
    p = jnp.stack(cols, axis=3)                      # (n, oh, ow, kh*kw, c)
    return p.reshape(n * oh * ow, kh * kw * c), oh, ow


def conv2d_nhwc(x, wmat, b, kh, kw, stride):
    # TODO(synk): move patch assembly into the conv kernel (grid over output
    # rows, overlapping input windows via pl.ds) instead of XLA-side slices.
    n = x.shape[0]
    cout = wmat.shape[1]
    patches, oh, ow = im2col_nhwc(x, kh, kw, stride)   # bf16 patches
    out = gemm_bias_relu(patches, wmat, b)
    return out.reshape(n, oh, ow, cout)                # NHWC, bf16, lane-dense C


# ---------------------------------------------------------------------------
# Parameters: torch-layout init + one-time host-side prep to kernel layout
# ---------------------------------------------------------------------------

def _conv_out_hw(s):
    s = (s - 8) // 4 + 1     # conv1 k=8 s=4
    s = (s - 4) // 2 + 1     # conv2 k=4 s=2
    s = (s - 3) // 1 + 1     # conv3 k=3 s=1
    return s


def init_params(key, input_shape, num_actions):
    """Deterministic init mirroring the PyTorch module's shapes/layout."""
    c, h, w = input_shape
    conv_out_size = 64 * _conv_out_hw(h) * _conv_out_hw(w)
    ks = jax.random.split(key, 10)

    def uni(k, shape, bound):
        return jax.random.uniform(k, shape, jnp.float32, -bound, bound)

    p = {}
    b1 = 1.0 / math.sqrt(c * 8 * 8)
    p["cw1"] = uni(ks[0], (32, c, 8, 8), b1)
    p["cb1"] = uni(ks[1], (32,), b1)
    b2 = 1.0 / math.sqrt(32 * 4 * 4)
    p["cw2"] = uni(ks[2], (64, 32, 4, 4), b2)
    p["cb2"] = uni(ks[3], (64,), b2)
    b3 = 1.0 / math.sqrt(64 * 3 * 3)
    p["cw3"] = uni(ks[4], (64, 64, 3, 3), b3)
    p["cb3"] = uni(ks[5], (64,), b3)

    std1 = math.sqrt(3.0 / conv_out_size)
    p["fw1"] = uni(ks[6], (512, conv_out_size), std1)
    p["fb1"] = uni(ks[7], (512,), std1)
    p["fsw1"] = jnp.full((512, conv_out_size), SIGMA_INIT, jnp.float32)
    p["fsb1"] = jnp.full((512,), SIGMA_INIT, jnp.float32)

    std2 = math.sqrt(3.0 / 512)
    p["fw2"] = uni(ks[8], (num_actions, 512), std2)
    p["fb2"] = uni(ks[9], (num_actions,), std2)
    p["fsw2"] = jnp.full((num_actions, 512), SIGMA_INIT, jnp.float32)
    p["fsb2"] = jnp.full((num_actions,), SIGMA_INIT, jnp.float32)
    return p


def prep_params(p, input_shape, num_actions):
    """One-time host-side transforms to the kernel-friendly layout:
       conv weights -> (KH*KW*Cin_pad, 128) bf16 (Cout padded to 128 lanes,
       zero rows for the previous layer's padded channels, 1/256 folded into
       conv1); fc weights -> (K, Nout) bf16 with fc1 rows permuted to the
       padded NHWC flatten order; fc2 padded to a 128-lane-wide output."""
    c, h, w = input_shape
    oh, ow = _conv_out_hw(h), _conv_out_hw(w)
    a_pad = _round_up(num_actions, LANE)
    c_pad = LANE                      # conv output channels padded to 128

    def conv_w(wt, cin_pad, scale=1.0):
        cout, cin, kh, kw = wt.shape
        m = jnp.transpose(wt, (2, 3, 1, 0)) * scale          # (kh, kw, cin, cout)
        m = jnp.pad(m, ((0, 0), (0, 0), (0, cin_pad - cin), (0, c_pad - cout)))
        return m.reshape(kh * kw * cin_pad, c_pad).astype(jnp.bfloat16)

    def conv_b(bv):
        return jnp.pad(bv.reshape(1, -1), ((0, 0), (0, c_pad - bv.shape[0])))

    def fc1_rows(wm):
        # torch NCHW flatten order (c, y, x) -> padded NHWC order (y, x, c_pad)
        m = wm.reshape(-1, 64, oh, ow).transpose(0, 2, 3, 1)  # (512, oh, ow, 64)
        m = jnp.pad(m, ((0, 0), (0, 0), (0, 0), (0, c_pad - 64)))
        return m.reshape(-1, oh * ow * c_pad).T               # (K1, 512)

    def pad_cols(m2d, width):
        return jnp.pad(m2d, ((0, 0), (0, width - m2d.shape[1])))

    kp = {}
    kp["cw1"] = conv_w(p["cw1"], c, 1.0 / 256.0)   # fold the x/256 input scaling
    kp["cb1"] = conv_b(p["cb1"])
    kp["cw2"] = conv_w(p["cw2"], c_pad)
    kp["cb2"] = conv_b(p["cb2"])
    kp["cw3"] = conv_w(p["cw3"], c_pad)
    kp["cb3"] = conv_b(p["cb3"])

    kp["fw1"] = fc1_rows(p["fw1"]).astype(jnp.bfloat16)           # (K1, 512)
    kp["fsw1"] = fc1_rows(p["fsw1"]).astype(jnp.bfloat16)
    kp["fb1"] = p["fb1"].reshape(1, -1)
    kp["fsb1"] = p["fsb1"].reshape(1, -1)

    kp["fw2"] = pad_cols(p["fw2"].T, a_pad).astype(jnp.bfloat16)  # (512, A_pad)
    kp["fsw2"] = pad_cols(p["fsw2"].T, a_pad).astype(jnp.bfloat16)
    kp["fb2"] = pad_cols(p["fb2"].reshape(1, -1), a_pad)
    kp["fsb2"] = pad_cols(p["fsb2"].reshape(1, -1), a_pad)
    return kp


# ---------------------------------------------------------------------------
# Forward pass
# ---------------------------------------------------------------------------

def noisy_dqn_forward(kparams, x_nchw, noise_key, num_actions):
    n = x_nchw.shape[0]
    # NCHW -> NHWC once; uint8 -> bf16 is exact for 0..255 (the /256 is folded
    # into conv1's weights).
    x = jnp.transpose(x_nchw, (0, 2, 3, 1)).astype(jnp.bfloat16)

    h = conv2d_nhwc(x, kparams["cw1"], kparams["cb1"], 8, 8, 4)
    h = conv2d_nhwc(h, kparams["cw2"], kparams["cb2"], 4, 4, 2)
    h = conv2d_nhwc(h, kparams["cw3"], kparams["cb3"], 3, 3, 1)
    flat = h.reshape(n, -1)    # NHWC flatten; fw1 rows were permuted to match

    m_pad = _round_up(n, 8)    # keep at least one full sublane of batch rows
    if m_pad != n:
        flat = jnp.pad(flat, ((0, m_pad - n), (0, 0)))

    # Fresh iid N(0,1) noise every forward, like epsilon_weight.normal_().
    # TODO(synk): draw this in-kernel with pltpu.prng_seed/stateful_normal on
    # real hardware; that path has no CPU/interpret lowering in this sandbox.
    k1 = flat.shape[1]
    n1 = kparams["fw1"].shape[1]
    a_pad = kparams["fw2"].shape[1]
    ks = jax.random.split(noise_key, 4)
    ew1 = jax.random.normal(ks[0], (k1, n1), jnp.bfloat16)
    eb1 = jax.random.normal(ks[1], (1, n1), jnp.float32)
    ew2 = jax.random.normal(ks[2], (n1, a_pad), jnp.bfloat16)
    eb2 = jax.random.normal(ks[3], (1, a_pad), jnp.float32)

    q = fused_noisy_fc(flat, kparams, ew1, eb1, ew2, eb2)
    return q[:n, :num_actions]


# ---------------------------------------------------------------------------
# Main
# ---------------------------------------------------------------------------

if __name__ == "__main__":
    input_shape = (4, 36, 36)   # small Atari-like frame stack (C, H, W)
    num_actions = 6
    batch = 2

    key = jax.random.PRNGKey(0)
    k_param, k_data, k_noise = jax.random.split(key, 3)

    params = init_params(k_param, input_shape, num_actions)
    kparams = prep_params(params, input_shape, num_actions)

    x = jax.random.randint(k_data, (batch,) + input_shape, 0, 256,
                           dtype=jnp.int32).astype(jnp.uint8)

    q_values = noisy_dqn_forward(kparams, x, k_noise, num_actions)
    q_values = jax.block_until_ready(q_values)

    assert q_values.shape == (batch, num_actions)
    assert q_values.dtype == jnp.float32
    assert bool(jnp.all(jnp.isfinite(q_values)))
    print("KERNEL_OK")
</pallas_src>

<mosaic_0001>
module attributes {stable_mosaic.version = 11 : i64} {
  func.func @_gemm_bias_relu_kernel(%arg0: i32, %arg1: memref<128x256xbf16, #tpu.memory_space<vmem>>, %arg2: memref<256x128xbf16, #tpu.memory_space<vmem>>, %arg3: memref<1x128xf32, #tpu.memory_space<vmem>>, %arg4: memref<128x128xbf16, #tpu.memory_space<vmem>>) attributes {dimension_semantics = [#tpu.dimension_semantics<parallel>], iteration_bounds = array<i64: 1>, scalar_prefetch = 0 : i64, scratch_operands = 0 : i64, tpu.core_type = #tpu.core_type<tc>, window_params = [{transform_indices = @transform_0, window_bounds = array<i64: 128, 256>}, {pipeline_mode = #tpu.pipeline_mode<synchronous>, transform_indices = @transform_1, window_bounds = array<i64: 256, 128>}, {pipeline_mode = #tpu.pipeline_mode<synchronous>, transform_indices = @transform_2, window_bounds = array<i64: 1, 128>}, {transform_indices = @transform_3, window_bounds = array<i64: 128, 128>}]} {
    %c0 = arith.constant 0 : index
    %c0_0 = arith.constant 0 : index
    %0 = vector.load %arg1[%c0, %c0_0] : memref<128x256xbf16, #tpu.memory_space<vmem>>, vector<128x256xbf16>
    %c0_1 = arith.constant 0 : index
    %c0_2 = arith.constant 0 : index
    %1 = vector.load %arg2[%c0_1, %c0_2] : memref<256x128xbf16, #tpu.memory_space<vmem>>, vector<256x128xbf16>
    %cst = arith.constant dense<0.000000e+00> : vector<128x128xf32>
    %2 = tpu.matmul %0, %1, %cst {dimension_numbers = #tpu.dot_dimension_numbers<[1], [0], [0], [1], [0, 0, 1, 1], [], []>} : vector<128x256xbf16>, vector<256x128xbf16>, vector<128x128xf32> -> vector<128x128xf32>
    %c0_3 = arith.constant 0 : index
    %c0_4 = arith.constant 0 : index
    %3 = vector.load %arg3[%c0_3, %c0_4] : memref<1x128xf32, #tpu.memory_space<vmem>>, vector<1x128xf32>
    %4 = vector.broadcast %3 : vector<1x128xf32> to vector<128x128xf32>
    %5 = arith.addf %2, %4 : vector<128x128xf32>
    %cst_5 = arith.constant 0.000000e+00 : f32
    %6 = vector.broadcast %cst_5 : f32 to vector<128x128xf32>
    %7 = arith.maximumf %5, %6 : vector<128x128xf32>
    %8 = arith.truncf %7 : vector<128x128xf32> to vector<128x128xbf16>
    %c0_6 = arith.constant 0 : index
    %c0_7 = arith.constant 0 : index
    %9 = vector.load %arg4[%c0_6, %c0_7] : memref<128x128xbf16, #tpu.memory_space<vmem>>, vector<128x128xbf16>
    tpu.vector_store %arg4[%c0_6, %c0_7], %8 {strides = array<i32>} : memref<128x128xbf16, #tpu.memory_space<vmem>>, vector<128x128xbf16>,
    return
  }
  func.func @transform_0(%arg0: i32) -> (i32, i32) {
    %c0_i32 = arith.constant 0 : i32
    %c0_i32_0 = arith.constant 0 : i32
    return %arg0, %c0_i32 : i32, i32
  }
  func.func @transform_1(%arg0: i32) -> (i32, i32) {
    %c0_i32 = arith.constant 0 : i32
    %c0_i32_0 = arith.constant 0 : i32
    %c0_i32_1 = arith.constant 0 : i32
    return %c0_i32, %c0_i32_0 : i32, i32
  }
  func.func @transform_2(%arg0: i32) -> (i32, i32) {
    %c0_i32 = arith.constant 0 : i32
    %c0_i32_0 = arith.constant 0 : i32
    %c0_i32_1 = arith.constant 0 : i32
    return %c0_i32, %c0_i32_0 : i32, i32
  }
  func.func @transform_3(%arg0: i32) -> (i32, i32) {
    %c0_i32 = arith.constant 0 : i32
    %c0_i32_0 = arith.constant 0 : i32
    return %arg0, %c0_i32 : i32, i32
  }
}

</mosaic_0001>

<llo_original>
// kernel: tpu_custom_call.1
$region0: #{tpu_custom_call.1}
  #allocation0 [shape = 'u32[]', space=smem, size = 0x4, offset = 0x4, fixed_abs, tag = 'smem constant byte address 0x4 - core index']
  #allocation1 [shape = 'u32[144,128]{1,0:T(1,128)}', space=vmem, size = 0x12000, scoped, tag = 'internal scratch']
  %s0 = inlined_call_operand.hbm [shape: bf16[128,256], index: 0, kind: input, shape index: {}]
  %s1 = inlined_call_operand.hbm [shape: bf16[256,128], index: 1, kind: input, shape index: {}]
  %s2 = inlined_call_operand.vmem [shape: f32[1,128], index: 2, kind: input, shape index: {}]
  %s3 = inlined_call_operand.hbm [shape: bf16[128,128], index: 3, kind: output, shape index: {}]
  %s4 = sld [smem:[#allocation0]]
  $region30: #{tpu_custom_call.1} parent=0
    _
  %s6 = ssub.s32 1, %s4
  %s7 = scalar_select 0, %s6, %s4
  $region1: #{tpu_custom_call.1} parent=0
    #allocation2 [shape = 'u8[65536]{0}', space=vmem, size = 0x10000, scoped, tag = 'input window, operand 0, single buffered']
    #allocation3 [shape = 's32[1]{0}', space=sflag, size = 0x4, scoped, tag = 'scoped memory for tpu_custom_call.1']
    #allocation4 [shape = 's32[1]{0}', space=sflag, size = 0x4, scoped, tag = 'scoped memory for tpu_custom_call.1']
    #allocation5 [shape = 'u8[65536]{0}', space=vmem, size = 0x10000, scoped, tag = 'input window, operand 1, single buffered']
    #allocation6 [shape = 's32[1]{0}', space=sflag, size = 0x4, scoped, tag = 'scoped memory for tpu_custom_call.1']
    #allocation7 [shape = 'u8[32768]{0}', space=vmem, size = 0x8000, scoped, tag = 'output window, operand 0, single buffered']
    %8 = vsyncpa [#allocation3], 0
    %9 = vsyncpa [#allocation6], 0
    %10 = vsyncpa [#allocation4], 0
    // Predicated region
    $region2: #{tpu_custom_call.1} parent=1 // pred_check
      _
    $region3: #{tpu_custom_call.1} parent=1 // pred_check_branch
      %12 = sbr.rel (0) target = $region5
    $region4: #{tpu_custom_call.1} parent=1 // pred_region
      %s14 = ssub.s32 2048, 2048
      %15 = vsyncadd [#allocation3], %s14
      %s16 = sshll.u32 [#allocation2], 4
      %s17 = int_to_ptr.vmem [resolvable:$true] %s16
      %22 = dma.hbm_to_vmem [thread:$0]  %s0, 2048, %s17, [#allocation3], 128, 128, 8
    $region5: #{tpu_custom_call.1} parent=1 // pred_fallthru
      _
    // Predicated region
    $region6: #{tpu_custom_call.1} parent=1 // pred_check
      _
    $region7: #{tpu_custom_call.1} parent=1 // pred_check_branch
      %24 = sbr.rel (0) target = $region9
    $region8: #{tpu_custom_call.1} parent=1 // pred_region
      %s26 = ssub.s32 2048, 2048
      %27 = vsyncadd [#allocation6], %s26
      %s28 = sshll.u32 [#allocation5], 4
      %s29 = int_to_ptr.vmem [resolvable:$true] %s28
      %34 = dma.hbm_to_vmem [thread:$0]  %s1, 2048, %s29, [#allocation6], 64, 64, 4
    $region9: #{tpu_custom_call.1} parent=1 // pred_fallthru
      _
    // Predicated region
    $region10: #{tpu_custom_call.1} parent=1 // pred_check
      _
    $region11: #{tpu_custom_call.1} parent=1 // pred_check_branch
      %36 = sbr.rel (0) target = $region13
    $region12: #{tpu_custom_call.1} parent=1 // pred_region
      _
    $region13: #{tpu_custom_call.1} parent=1 // pred_fallthru
      _
    // Predicated region
    $region14: #{tpu_custom_call.1} parent=1 // pred_check
      _
    $region15: #{tpu_custom_call.1} parent=1 // pred_check_branch
      %38 = sbr.rel (0) target = $region17
    $region16: #{tpu_custom_call.1} parent=1 // pred_region
      %39 = dma.done [#allocation3], 2048
    $region17: #{tpu_custom_call.1} parent=1 // pred_fallthru
      _
    // Predicated region
    $region18: #{tpu_custom_call.1} parent=1 // pred_check
      _
    $region19: #{tpu_custom_call.1} parent=1 // pred_check_branch
      %41 = sbr.rel (0) target = $region21
    $region20: #{tpu_custom_call.1} parent=1 // pred_region
      %42 = dma.done [#allocation6], 2048
    $region21: #{tpu_custom_call.1} parent=1 // pred_fallthru
      _
    %v44 = vld [vmem:[#allocation2] sm:$0xff]
    %v45 = vld [vmem:[#allocation2 + $0x8] sm:$0xff]
    %v46 = vld [vmem:[#allocation2 + $0x10] sm:$0xff]
    %v47 = vld [vmem:[#allocation2 + $0x18] sm:$0xff]
    %v48 = vld [vmem:[#allocation2 + $0x20] sm:$0xff]
    %v49 = vld [vmem:[#allocation2 + $0x28] sm:$0xff]
    %v50 = vld [vmem:[#allocation2 + $0x30] sm:$0xff]
    %v51 = vld [vmem:[#allocation2 + $0x38] sm:$0xff]
    %v52 = vld [vmem:[#allocation2 + $0x40] sm:$0xff]
    %v53 = vld [vmem:[#allocation2 + $0x48] sm:$0xff]
    %v54 = vld [vmem:[#allocation2 + $0x50] sm:$0xff]
    %v55 = vld [vmem:[#allocation2 + $0x58] sm:$0xff]
    %v56 = vld [vmem:[#allocation2 + $0x60] sm:$0xff]
    %v57 = vld [vmem:[#allocation2 + $0x68] sm:$0xff]
    %v58 = vld [vmem:[#allocation2 + $0x70] sm:$0xff]
    %v59 = vld [vmem:[#allocation2 + $0x78] sm:$0xff]
    %v60 = vld [vmem:[#allocation5] sm:$0xf]
    %v61 = vld [vmem:[#allocation5 + $0x4] sm:$0xf]
    %v62 = vld [vmem:[#allocation5 + $0x8] sm:$0xf]
    %v63 = vld [vmem:[#allocation5 + $0xc] sm:$0xf]
    %v64 = vld [vmem:[#allocation5 + $0x10] sm:$0xf]
    %v65 = vld [vmem:[#allocation5 + $0x14] sm:$0xf]
    %v66 = vld [vmem:[#allocation5 + $0x18] sm:$0xf]
    %v67 = vld [vmem:[#allocation5 + $0x1c] sm:$0xf]
    %v68 = vld [vmem:[#allocation5 + $0x20] sm:$0xf]
    %v69 = vld [vmem:[#allocation5 + $0x24] sm:$0xf]
    %v70 = vld [vmem:[#allocation5 + $0x28] sm:$0xf]
    %v71 = vld [vmem:[#allocation5 + $0x2c] sm:$0xf]
    %v72 = vld [vmem:[#allocation5 + $0x30] sm:$0xf]
    %v73 = vld [vmem:[#allocation5 + $0x34] sm:$0xf]
    %v74 = vld [vmem:[#allocation5 + $0x38] sm:$0xf]
    %v75 = vld [vmem:[#allocation5 + $0x3c] sm:$0xf]
    %v76 = vld [vmem:[#allocation5 + $0x40] sm:$0xf]
    %v77 = vld [vmem:[#allocation5 + $0x44] sm:$0xf]
    %v78 = vld [vmem:[#allocation5 + $0x48] sm:$0xf]
    %v79 = vld [vmem:[#allocation5 + $0x4c] sm:$0xf]
    %v80 = vld [vmem:[#allocation5 + $0x50] sm:$0xf]
    %v81 = vld [vmem:[#allocation5 + $0x54] sm:$0xf]
    %v82 = vld [vmem:[#allocation5 + $0x58] sm:$0xf]
    %v83 = vld [vmem:[#allocation5 + $0x5c] sm:$0xf]
    %v84 = vld [vmem:[#allocation5 + $0x60] sm:$0xf]
    %v85 = vld [vmem:[#allocation5 + $0x64] sm:$0xf]
    %v86 = vld [vmem:[#allocation5 + $0x68] sm:$0xf]
    %v87 = vld [vmem:[#allocation5 + $0x6c] sm:$0xf]
    %v88 = vld [vmem:[#allocation5 + $0x70] sm:$0xf]
    %v89 = vld [vmem:[#allocation5 + $0x74] sm:$0xf]
    %v90 = vld [vmem:[#allocation5 + $0x78] sm:$0xf]
    %v91 = vld [vmem:[#allocation5 + $0x7c] sm:$0xf]
    %v92 = vld [vmem:[%s2] sm:$0x1]
    %v94 = vlaneseq
    %v95 = vshrl.u32 %v94, 7
    %v96 = vsub.s32 0, %v95
    %v97 = vrot.slane %v92, %v96
    %v115 = vunpack.c.l.b16 %v44
    %v116 = vunpack.c.h.b16 %v44
    %v117 = vunpack.c.l.b16 %v45
    %v118 = vunpack.c.h.b16 %v45
    %v119 = vunpack.c.l.b16 %v46
    %v120 = vunpack.c.h.b16 %v46
    %v121 = vunpack.c.l.b16 %v47
    %v122 = vunpack.c.h.b16 %v47
    %v123 = vunpack.c.l.b16 %v48
    %v124 = vunpack.c.h.b16 %v48
    %v125 = vunpack.c.l.b16 %v49
    %v126 = vunpack.c.h.b16 %v49
    %v127 = vunpack.c.l.b16 %v50
    %v128 = vunpack.c.h.b16 %v50
    %v129 = vunpack.c.l.b16 %v51
    %v130 = vunpack.c.h.b16 %v51
    %v131 = vunpack.c.l.b16 %v52
    %v132 = vunpack.c.h.b16 %v52
    %v133 = vunpack.c.l.b16 %v53
    %v134 = vunpack.c.h.b16 %v53
    %v135 = vunpack.c.l.b16 %v54
    %v136 = vunpack.c.h.b16 %v54
    %v137 = vunpack.c.l.b16 %v55
    %v138 = vunpack.c.h.b16 %v55
    %v139 = vunpack.c.l.b16 %v56
    %v140 = vunpack.c.h.b16 %v56
    %v141 = vunpack.c.l.b16 %v57
    %v142 = vunpack.c.h.b16 %v57
    %v143 = vunpack.c.l.b16 %v58
    %v144 = vunpack.c.h.b16 %v58
    %v145 = vunpack.c.l.b16 %v59
    %v146 = vunpack.c.h.b16 %v59
    %v147 = vpack.c.b16 %v117, %v115
    %v148 = vpack.c.b16 %v118, %v116
    %v149 = vpack.c.b16 %v121, %v119
    %v150 = vpack.c.b16 %v122, %v120
    %v151 = vpack.c.b16 %v125, %v123
    %v152 = vpack.c.b16 %v126, %v124
    %v153 = vpack.c.b16 %v129, %v127
    %v154 = vpack.c.b16 %v130, %v128
    %v155 = vpack.c.b16 %v133, %v131
    %v156 = vpack.c.b16 %v134, %v132
    %v157 = vpack.c.b16 %v137, %v135
    %v158 = vpack.c.b16 %v138, %v136
    %v159 = vpack.c.b16 %v141, %v139
    %v160 = vpack.c.b16 %v142, %v140
    %v161 = vpack.c.b16 %v145, %v143
    %v162 = vpack.c.b16 %v146, %v144
    %v211 = vunpack.c.l.b16 %v60
    %v212 = vunpack.c.l.b16 %v61
    %v213 = vunpack.c.l.b16 %v62
    %v214 = vunpack.c.l.b16 %v63
    %v215 = vunpack.c.l.b16 %v64
    %v216 = vunpack.c.l.b16 %v65
    %v217 = vunpack.c.l.b16 %v66
    %v218 = vunpack.c.l.b16 %v67
    %v219 = vunpack.c.l.b16 %v68
    %v220 = vunpack.c.l.b16 %v69
    %v221 = vunpack.c.l.b16 %v70
    %v222 = vunpack.c.l.b16 %v71
    %v223 = vunpack.c.l.b16 %v72
    %v224 = vunpack.c.l.b16 %v73
    %v225 = vunpack.c.l.b16 %v74
    %v226 = vunpack.c.l.b16 %v75
    %v227 = vunpack.c.l.b16 %v76
    %v228 = vunpack.c.l.b16 %v77
    %v229 = vunpack.c.l.b16 %v78
    %v230 = vunpack.c.l.b16 %v79
    %v231 = vunpack.c.l.b16 %v80
    %v232 = vunpack.c.l.b16 %v81
    %v233 = vunpack.c.l.b16 %v82
    %v234 = vunpack.c.l.b16 %v83
    %v235 = vunpack.c.l.b16 %v84
    %v236 = vunpack.c.l.b16 %v85
    %v237 = vunpack.c.l.b16 %v86
    %v238 = vunpack.c.l.b16 %v87
    %v239 = vunpack.c.l.b16 %v88
    %v240 = vunpack.c.l.b16 %v89
    %v241 = vunpack.c.l.b16 %v90
    %v242 = vunpack.c.l.b16 %v91
    %v243 = vpack.c.b16 %v212, %v211
    %v244 = vpack.c.b16 %v214, %v213
    %v245 = vpack.c.b16 %v216, %v215
    %v246 = vpack.c.b16 %v218, %v217
    %v247 = vpack.c.b16 %v220, %v219
    %v248 = vpack.c.b16 %v222, %v221
    %v249 = vpack.c.b16 %v224, %v223
    %v250 = vpack.c.b16 %v226, %v225
    %v251 = vpack.c.b16 %v228, %v227
    %v252 = vpack.c.b16 %v230, %v229
    %v253 = vpack.c.b16 %v232, %v231
    %v254 = vpack.c.b16 %v234, %v233
    %v255 = vpack.c.b16 %v236, %v235
    %v256 = vpack.c.b16 %v238, %v237
    %v257 = vpack.c.b16 %v240, %v239
    %v258 = vpack.c.b16 %v242, %v241
    %275 = vmatprep.subr.bf16.mxu0 0
    %276 = vmatpush1.bf16.msra.mxu0 %v243
    %277 = vmatprep.subr.bf16.mxu0 0
    %278 = vmatpush1.bf16.msra.mxu0 %v244
    %279 = vmatprep.subr.bf16.mxu0 0
    %280 = vmatpush1.bf16.msra.mxu0 %v245
    %281 = vmatprep.subr.bf16.mxu0 0
    %282 = vmatpush1.bf16.msra.mxu0 %v246
    %283 = vmatprep.subr.bf16.mxu0 0
    %284 = vmatpush1.bf16.msra.mxu0 %v247
    %285 = vmatprep.subr.bf16.mxu0 0
    %286 = vmatpush1.bf16.msra.mxu0 %v248
    %287 = vmatprep.subr.bf16.mxu0 0
    %288 = vmatpush1.bf16.msra.mxu0 %v249
    %289 = vmatprep.subr.bf16.mxu0 0
    %290 = vmatpush1.bf16.msra.mxu0 %v250
    %291 = vmatprep.subr.bf16.mxu0 0
    %292 = vmatpush1.bf16.msra.mxu0 %v251
    %293 = vmatprep.subr.bf16.mxu0 0
    %294 = vmatpush1.bf16.msra.mxu0 %v252
    %295 = vmatprep.subr.bf16.mxu0 0
    %296 = vmatpush1.bf16.msra.mxu0 %v253
    %297 = vmatprep.subr.bf16.mxu0 0
    %298 = vmatpush1.bf16.msra.mxu0 %v254
    %299 = vmatprep.subr.bf16.mxu0 0
    %300 = vmatpush1.bf16.msra.mxu0 %v255
    %301 = vmatprep.subr.bf16.mxu0 0
    %302 = vmatpush1.bf16.msra.mxu0 %v256
    %303 = vmatprep.subr.bf16.mxu0 0
    %304 = vmatpush1.bf16.msra.mxu0 %v257
    %305 = vmatprep.subr.bf16.mxu0 0
    %306 = vmatpush1.bf16.msra.mxu0 %v258
    %307 = vmatprep.mubr.bf16.mxu0 %v148
    %308 = vmatmul.mubr.bf16.gmra.mrb[0].mxu0 %v147
    %v309 = vpop.f32.mrb[0].mxu0
    %v310 = vadd.f32 %v97, %v309
    %v311 = vpop.f32.mrb[0].mxu0
    %v312 = vpop.f32.mrb[0].mxu0
    %v313 = vadd.f32 %v97, %v312
    %v314 = vpop.f32.mrb[0].mxu0
    %315 = vmatprep.mubr.bf16.mxu0 %v150
    %316 = vmatmul.mubr.bf16.gmra.mrb[0].mxu0 %v149
    %v317 = vpop.f32.mrb[0].mxu0
    %v318 = vadd.f32 %v97, %v317
    %v319 = vpop.f32.mrb[0].mxu0
    %v320 = vpop.f32.mrb[0].mxu0
    %v321 = vadd.f32 %v97, %v320
    %v322 = vpop.f32.mrb[0].mxu0
    %323 = vmatprep.mubr.bf16.mxu0 %v152
    %324 = vmatmul.mubr.bf16.gmra.mrb[0].mxu0 %v151
    %v325 = vpop.f32.mrb[0].mxu0
    %v326 = vadd.f32 %v97, %v325
    %v327 = vpop.f32.mrb[0].mxu0
    %v328 = vpop.f32.mrb[0].mxu0
    %v329 = vadd.f32 %v97, %v328
    %v330 = vpop.f32.mrb[0].mxu0
    %331 = vmatprep.mubr.bf16.mxu0 %v154
    %332 = vmatmul.mubr.bf16.gmra.mrb[0].mxu0 %v153
    %v333 = vpop.f32.mrb[0].mxu0
    %v334 = vadd.f32 %v97, %v333
    %v335 = vpop.f32.mrb[0].mxu0
    %v336 = vpop.f32.mrb[0].mxu0
    %v337 = vadd.f32 %v97, %v336
    %v338 = vpop.f32.mrb[0].mxu0
    %339 = vmatprep.mubr.bf16.mxu0 %v156
    %340 = vmatmul.mubr.bf16.gmra.mrb[0].mxu0 %v155
    %v341 = vpop.f32.mrb[0].mxu0
    %v342 = vadd.f32 %v97, %v341
    %v343 = vpop.f32.mrb[0].mxu0
    %v344 = vpop.f32.mrb[0].mxu0
    %v345 = vadd.f32 %v97, %v344
    %v346 = vpop.f32.mrb[0].mxu0
    %347 = vmatprep.mubr.bf16.mxu0 %v158
    %348 = vmatmul.mubr.bf16.gmra.mrb[0].mxu0 %v157
    %v349 = vpop.f32.mrb[0].mxu0
    %v350 = vadd.f32 %v97, %v349
    %v351 = vpop.f32.mrb[0].mxu0
    %v352 = vpop.f32.mrb[0].mxu0
    %v353 = vadd.f32 %v97, %v352
    %v354 = vpop.f32.mrb[0].mxu0
    %355 = vmatprep.mubr.bf16.mxu0 %v160
    %356 = vmatmul.mubr.bf16.gmra.mrb[0].mxu0 %v159
    %v357 = vpop.f32.mrb[0].mxu0
    %v358 = vadd.f32 %v97, %v357
    %v359 = vpop.f32.mrb[0].mxu0
    %v360 = vpop.f32.mrb[0].mxu0
    %v361 = vadd.f32 %v97, %v360
    %v362 = vpop.f32.mrb[0].mxu0
    %363 = vmatprep.mubr.bf16.mxu0 %v162
    %364 = vmatmul.mubr.bf16.gmra.mrb[0].mxu0 %v161
    %v365 = vpop.f32.mrb[0].mxu0
    %v366 = vadd.f32 %v97, %v365
    %v367 = vpop.f32.mrb[0].mxu0
    %v368 = vpop.f32.mrb[0].mxu0
    %v369 = vadd.f32 %v97, %v368
    %v370 = vpop.f32.mrb[0].mxu0
    %371 = vdwg.mxu0
    %v372 = vmax.f32 %v310, 0.0
    %v373 = vmax.f32 %v313, 0.0
    %v374 = vmax.f32 %v318, 0.0
    %v375 = vmax.f32 %v321, 0.0
    %v376 = vmax.f32 %v326, 0.0
    %v377 = vmax.f32 %v329, 0.0
    %v378 = vmax.f32 %v334, 0.0
    %v379 = vmax.f32 %v337, 0.0
    %v380 = vmax.f32 %v342, 0.0
    %v381 = vmax.f32 %v345, 0.0
    %v382 = vmax.f32 %v350, 0.0
    %v383 = vmax.f32 %v353, 0.0
    %v384 = vmax.f32 %v358, 0.0
    %v385 = vmax.f32 %v361, 0.0
    %v386 = vmax.f32 %v366, 0.0
    %v387 = vmax.f32 %v369, 0.0
    %v388 = vpack.c.bf16 %v373, %v372
    %v389 = vpack.c.bf16 %v375, %v374
    %v390 = vpack.c.bf16 %v377, %v376
    %v391 = vpack.c.bf16 %v379, %v378
    %v392 = vpack.c.bf16 %v381, %v380
    %v393 = vpack.c.bf16 %v383, %v382
    %v394 = vpack.c.bf16 %v385, %v384
    %v395 = vpack.c.bf16 %v387, %v386
    %v404 = vunpack.c.l.b16 %v388
    %v405 = vunpack.c.h.b16 %v388
    %v406 = vunpack.c.l.b16 %v389
    %v407 = vunpack.c.h.b16 %v389
    %v408 = vunpack.c.l.b16 %v390
    %v409 = vunpack.c.h.b16 %v390
    %v410 = vunpack.c.l.b16 %v391
    %v411 = vunpack.c.h.b16 %v391
    %v412 = vunpack.c.l.b16 %v392
    %v413 = vunpack.c.h.b16 %v392
    %v414 = vunpack.c.l.b16 %v393
    %v415 = vunpack.c.h.b16 %v393
    %v416 = vunpack.c.l.b16 %v394
    %v417 = vunpack.c.h.b16 %v394
    %v418 = vunpack.c.l.b16 %v395
    %v419 = vunpack.c.h.b16 %v395
    %v420 = vpack.c.b16 %v404, %v404
    %v421 = vpack.c.b16 %v405, %v405
    %v422 = vpack.c.b16 %v406, %v406
    %v423 = vpack.c.b16 %v407, %v407
    %v424 = vpack.c.b16 %v408, %v408
    %v425 = vpack.c.b16 %v409, %v409
    %v426 = vpack.c.b16 %v410, %v410
    %v427 = vpack.c.b16 %v411, %v411
    %v428 = vpack.c.b16 %v412, %v412
    %v429 = vpack.c.b16 %v413, %v413
    %v430 = vpack.c.b16 %v414, %v414
    %v431 = vpack.c.b16 %v415, %v415
    %v432 = vpack.c.b16 %v416, %v416
    %v433 = vpack.c.b16 %v417, %v417
    %v434 = vpack.c.b16 %v418, %v418
    %v435 = vpack.c.b16 %v419, %v419
    %452 = vst [vmem:[#allocation7] sm:$0xf] %v420
    %453 = vst [vmem:[#allocation7 + $0x4] sm:$0xf] %v421
    %454 = vst [vmem:[#allocation7 + $0x8] sm:$0xf] %v422
    %455 = vst [vmem:[#allocation7 + $0xc] sm:$0xf] %v423
    %456 = vst [vmem:[#allocation7 + $0x10] sm:$0xf] %v424
    %457 = vst [vmem:[#allocation7 + $0x14] sm:$0xf] %v425
    %458 = vst [vmem:[#allocation7 + $0x18] sm:$0xf] %v426
    %459 = vst [vmem:[#allocation7 + $0x1c] sm:$0xf] %v427
    %460 = vst [vmem:[#allocation7 + $0x20] sm:$0xf] %v428
    %461 = vst [vmem:[#allocation7 + $0x24] sm:$0xf] %v429
    %462 = vst [vmem:[#allocation7 + $0x28] sm:$0xf] %v430
    %463 = vst [vmem:[#allocation7 + $0x2c] sm:$0xf] %v431
    %464 = vst [vmem:[#allocation7 + $0x30] sm:$0xf] %v432
    %465 = vst [vmem:[#allocation7 + $0x34] sm:$0xf] %v433
    %466 = vst [vmem:[#allocation7 + $0x38] sm:$0xf] %v434
    %467 = vst [vmem:[#allocation7 + $0x3c] sm:$0xf] %v435
    // Predicated region
    $region22: #{tpu_custom_call.1} parent=1 // pred_check
      _
    $region23: #{tpu_custom_call.1} parent=1 // pred_check_branch
      %469 = sbr.rel (0) target = $region25
    $region24: #{tpu_custom_call.1} parent=1 // pred_region
      %s471 = ssub.s32 1024, 1024
      %472 = vsyncadd [#allocation4], %s471
      %s473 = sshll.u32 [#allocation7], 4
      %s474 = int_to_ptr.vmem [resolvable:$true] %s473
      %479 = dma.vmem_to_hbm [thread:$0]  %s474, 1024, %s3, [#allocation4], 64, 64, 4
    $region25: #{tpu_custom_call.1} parent=1 // pred_fallthru
      _
    // Predicated region
    $region26: #{tpu_custom_call.1} parent=1 // pred_check
      _
    $region27: #{tpu_custom_call.1} parent=1 // pred_check_branch
      %481 = sbr.rel (0) target = $region29
    $region28: #{tpu_custom_call.1} parent=1 // pred_region
      %482 = dma.done [#allocation4], 1024
    $region29: #{tpu_custom_call.1} parent=1 // pred_fallthru
      _
    %483 = vsyncpa [#allocation3], 1
    %484 = vsyncpa [#allocation6], 1
    %485 = vsyncpa [#allocation4], 1

</llo_original>
